<compile_context>
chip_gen: v7x
topology: tpu7x:2x2x1
jax: 0.10.0
libtpu: 0.0.40
codegen_flags: <defaults>
</compile_context>

<pallas_src>
import jax
import jax.numpy as jnp
from jax.experimental import pallas as pl
from jax.experimental.pallas import tpu as pltpu


def _mlp_kernel(x_ref, w1_ref, b1_ref, w2_ref, b2_ref, o_ref, acc_ref):
    k = pl.program_id(1)

    @pl.when(k == 0)
    def _():
        acc_ref[...] = jnp.zeros_like(acc_ref)

    # fc_in partial: [tm, D] @ [D, th] -> f32, plus bias slice.
    h = jnp.dot(x_ref[...], w1_ref[...], preferred_element_type=jnp.float32)
    h = h + b1_ref[...].astype(jnp.float32)

    # gelu_pytorch_tanh in f32: 0.5*h*(1 + tanh(sqrt(2/pi)*h*(1 + 0.044715*h^2)))
    c = 0.7978845608028654  # sqrt(2/pi)
    h2 = h * h
    g = 0.5 * h * (1.0 + jnp.tanh(c * h * (1.0 + 0.044715 * h2)))

    # fc_out partial: accumulate [tm, th] @ [th, O] into the f32 scratch.
    acc_ref[...] += jnp.dot(g.astype(w2_ref.dtype), w2_ref[...],
                            preferred_element_type=jnp.float32)

    @pl.when(k == pl.num_programs(1) - 1)
    def _():
        out = acc_ref[...] + b2_ref[...].astype(jnp.float32)
        o_ref[...] = out.astype(o_ref.dtype)


def _largest_divisor_tile(dim, target):
    """Largest tile <= target that evenly divides dim (avoids OOB garbage on
    the reduction axis)."""
    t = min(target, dim)
    while dim % t:
        t -= 1
    return t


def mlp_pallas(x, w1, b1, w2, b2, *, tile_m=256, tile_h=512):
    """x: [B, S, D] -> [B, S, O].

    w1: [D, H] (in_features, out_features), b1: [H]
    w2: [H, O], b2: [O]
    """
    B, S, D = x.shape
    H = w1.shape[1]
    O = w2.shape[1]
    M = B * S

    x2d = x.reshape(M, D)
    b1_2d = b1.reshape(1, H)
    b2_2d = b2.reshape(1, O)

    tm = min(tile_m, M)
    th = _largest_divisor_tile(H, tile_h)

    grid = (pl.cdiv(M, tm), H // th)

    itemsize = x.dtype.itemsize
    flops = 2 * M * (D * H + H * O)
    bytes_accessed = (
        M * D * itemsize
        + w1.size * w1.dtype.itemsize
        + w2.size * w2.dtype.itemsize
        + b1.size * b1.dtype.itemsize
        + b2.size * b2.dtype.itemsize
        + M * O * itemsize
    )

    out2d = pl.pallas_call(
        _mlp_kernel,
        out_shape=jax.ShapeDtypeStruct((M, O), x.dtype),
        grid_spec=pltpu.PrefetchScalarGridSpec(
            num_scalar_prefetch=0,
            grid=grid,
            in_specs=[
                pl.BlockSpec((tm, D), lambda i, k: (i, 0)),   # x M-tile
                pl.BlockSpec((D, th), lambda i, k: (0, k)),   # W1 hidden slab
                pl.BlockSpec((1, th), lambda i, k: (0, k)),   # b1 hidden slab
                pl.BlockSpec((th, O), lambda i, k: (k, 0)),   # W2 hidden slab
                pl.BlockSpec((1, O), lambda i, k: (0, 0)),    # b2 (full)
            ],
            out_specs=pl.BlockSpec((tm, O), lambda i, k: (i, 0)),
            scratch_shapes=[pltpu.VMEM((tm, O), jnp.float32)],  # f32 accumulator
        ),
        compiler_params=pltpu.CompilerParams(
            dimension_semantics=("parallel", "arbitrary"),
            vmem_limit_bytes=64 * 1024 * 1024,
        ),
        cost_estimate=pl.CostEstimate(
            flops=flops, transcendentals=M * H, bytes_accessed=bytes_accessed),
    )(x2d, w1, b1_2d, w2, b2_2d)

    return out2d.reshape(B, S, O)


def _reference(x, w1, b1, w2, b2):
    h = jnp.dot(x, w1) + b1
    c = 0.7978845608028654
    g = 0.5 * h * (1.0 + jnp.tanh(c * (h + 0.044715 * h ** 3)))
    return jnp.dot(g, w2) + b2


if __name__ == "__main__":
    key = jax.random.PRNGKey(0)

    # --- Test 1: small deterministic config (single grid step) ------------
    B, S, D, Hdim = 2, 8, 32, 64
    Odim = D  # output_dim defaults to input_dim

    kx, k1, kb1, k2, kb2, key = jax.random.split(key, 6)
    x = jax.random.normal(kx, (B, S, D), dtype=jnp.float32)
    w1 = jax.random.normal(k1, (D, Hdim), dtype=jnp.float32) * 0.05
    b1 = jax.random.normal(kb1, (Hdim,), dtype=jnp.float32) * 0.01
    w2 = jax.random.normal(k2, (Hdim, Odim), dtype=jnp.float32) * 0.05
    b2 = jax.random.normal(kb2, (Odim,), dtype=jnp.float32) * 0.01

    y = mlp_pallas(x, w1, b1, w2, b2)
    jax.block_until_ready(y)
    y_ref = _reference(x, w1, b1, w2, b2)
    assert y.shape == (B, S, Odim)
    assert jnp.allclose(y, y_ref, atol=1e-5, rtol=1e-5), "mismatch vs reference (small)"

    # --- Test 2: exercise multi-tile M and hidden-dim (k) accumulation ----
    B2, S2, D2, H2 = 2, 256, 128, 256
    O2 = D2
    kx, k1, kb1, k2, kb2, key = jax.random.split(key, 6)
    x2 = jax.random.normal(kx, (B2, S2, D2), dtype=jnp.float32)
    w1b = jax.random.normal(k1, (D2, H2), dtype=jnp.float32) * 0.05
    b1b = jax.random.normal(kb1, (H2,), dtype=jnp.float32) * 0.01
    w2b = jax.random.normal(k2, (H2, O2), dtype=jnp.float32) * 0.05
    b2b = jax.random.normal(kb2, (O2,), dtype=jnp.float32) * 0.01

    y2 = mlp_pallas(x2, w1b, b1b, w2b, b2b, tile_m=256, tile_h=128)
    jax.block_until_ready(y2)
    y2_ref = _reference(x2, w1b, b1b, w2b, b2b)
    assert y2.shape == (B2, S2, O2)
    assert jnp.allclose(y2, y2_ref, atol=1e-3, rtol=1e-3), "mismatch vs reference (tiled)"

    print("KERNEL_OK")
</pallas_src>

<mosaic_0001>
module attributes {stable_mosaic.version = 11 : i64} {
  func.func @_mlp_kernel(%arg0: i32, %arg1: i32, %arg2: memref<16x32xf32, #tpu.memory_space<vmem>>, %arg3: memref<32x64xf32, #tpu.memory_space<vmem>>, %arg4: memref<1x64xf32, #tpu.memory_space<vmem>>, %arg5: memref<64x32xf32, #tpu.memory_space<vmem>>, %arg6: memref<1x32xf32, #tpu.memory_space<vmem>>, %arg7: memref<16x32xf32, #tpu.memory_space<vmem>>, %arg8: memref<16x32xf32, #tpu.memory_space<vmem>>) attributes {dimension_semantics = [#tpu.dimension_semantics<parallel>, #tpu.dimension_semantics<arbitrary>], iteration_bounds = array<i64: 1, 1>, scalar_prefetch = 0 : i64, scratch_operands = 1 : i64, tpu.core_type = #tpu.core_type<tc>, window_params = [{transform_indices = @transform_0, window_bounds = array<i64: 16, 32>}, {transform_indices = @transform_1, window_bounds = array<i64: 32, 64>}, {transform_indices = @transform_2, window_bounds = array<i64: 1, 64>}, {transform_indices = @transform_3, window_bounds = array<i64: 64, 32>}, {pipeline_mode = #tpu.pipeline_mode<synchronous>, transform_indices = @transform_4, window_bounds = array<i64: 1, 32>}, {transform_indices = @transform_5, window_bounds = array<i64: 16, 32>}]} {
    %c0_i32 = arith.constant 0 : i32
    %0 = arith.cmpi eq, %arg1, %c0_i32 : i32
    %1 = arith.extui %0 : i1 to i32
    %c0_i32_0 = arith.constant 0 : i32
    %2 = arith.cmpi ne, %1, %c0_i32_0 : i32
    scf.if %2 {
      %cst_20 = arith.constant 0.000000e+00 : f32
      %31 = vector.broadcast %cst_20 : f32 to vector<16x32xf32>
      %c0_21 = arith.constant 0 : index
      %c0_22 = arith.constant 0 : index
      %32 = vector.load %arg8[%c0_21, %c0_22] : memref<16x32xf32, #tpu.memory_space<vmem>>, vector<16x32xf32>
      tpu.vector_store %arg8[%c0_21, %c0_22], %31 {strides = array<i32>} : memref<16x32xf32, #tpu.memory_space<vmem>>, vector<16x32xf32>,
    } else {
    }
    %c0 = arith.constant 0 : index
    %c0_1 = arith.constant 0 : index
    %3 = vector.load %arg2[%c0, %c0_1] : memref<16x32xf32, #tpu.memory_space<vmem>>, vector<16x32xf32>
    %c0_2 = arith.constant 0 : index
    %c0_3 = arith.constant 0 : index
    %4 = vector.load %arg3[%c0_2, %c0_3] : memref<32x64xf32, #tpu.memory_space<vmem>>, vector<32x64xf32>
    %cst = arith.constant dense<0.000000e+00> : vector<16x64xf32>
    %5 = tpu.matmul %3, %4, %cst {dimension_numbers = #tpu.dot_dimension_numbers<[1], [0], [0], [1], [0, 0, 1, 1], [], []>} : vector<16x32xf32>, vector<32x64xf32>, vector<16x64xf32> -> vector<16x64xf32>
    %c0_4 = arith.constant 0 : index
    %c0_5 = arith.constant 0 : index
    %6 = vector.load %arg4[%c0_4, %c0_5] : memref<1x64xf32, #tpu.memory_space<vmem>>, vector<1x64xf32>
    %7 = vector.broadcast %6 : vector<1x64xf32> to vector<16x64xf32>
    %8 = arith.addf %5, %7 : vector<16x64xf32>
    %9 = arith.mulf %8, %8 : vector<16x64xf32>
    %cst_6 = arith.constant 5.000000e-01 : f32
    %10 = vector.broadcast %cst_6 : f32 to vector<16x64xf32>
    %11 = arith.mulf %10, %8 : vector<16x64xf32>
    %cst_7 = arith.constant 0.797884583 : f32
    %12 = vector.broadcast %cst_7 : f32 to vector<16x64xf32>
    %13 = arith.mulf %12, %8 : vector<16x64xf32>
    %cst_8 = arith.constant 4.471500e-02 : f32
    %14 = vector.broadcast %cst_8 : f32 to vector<16x64xf32>
    %15 = arith.mulf %14, %9 : vector<16x64xf32>
    %cst_9 = arith.constant 1.000000e+00 : f32
    %16 = vector.broadcast %cst_9 : f32 to vector<16x64xf32>
    %17 = arith.addf %16, %15 : vector<16x64xf32>
    %18 = arith.mulf %13, %17 : vector<16x64xf32>
    %19 = math.tanh %18 : vector<16x64xf32>
    %cst_10 = arith.constant 1.000000e+00 : f32
    %20 = vector.broadcast %cst_10 : f32 to vector<16x64xf32>
    %21 = arith.addf %20, %19 : vector<16x64xf32>
    %22 = arith.mulf %11, %21 : vector<16x64xf32>
    %c0_11 = arith.constant 0 : index
    %c0_12 = arith.constant 0 : index
    %23 = vector.load %arg8[%c0_11, %c0_12] : memref<16x32xf32, #tpu.memory_space<vmem>>, vector<16x32xf32>
    %c0_13 = arith.constant 0 : index
    %c0_14 = arith.constant 0 : index
    %24 = vector.load %arg5[%c0_13, %c0_14] : memref<64x32xf32, #tpu.memory_space<vmem>>, vector<64x32xf32>
    %cst_15 = arith.constant dense<0.000000e+00> : vector<16x32xf32>
    %25 = tpu.matmul %22, %24, %cst_15 {dimension_numbers = #tpu.dot_dimension_numbers<[1], [0], [0], [1], [0, 0, 1, 1], [], []>} : vector<16x64xf32>, vector<64x32xf32>, vector<16x32xf32> -> vector<16x32xf32>
    %26 = arith.addf %23, %25 : vector<16x32xf32>
    %c0_16 = arith.constant 0 : index
    %c0_17 = arith.constant 0 : index
    %27 = vector.load %arg8[%c0_16, %c0_17] : memref<16x32xf32, #tpu.memory_space<vmem>>, vector<16x32xf32>
    tpu.vector_store %arg8[%c0_16, %c0_17], %26 {strides = array<i32>} : memref<16x32xf32, #tpu.memory_space<vmem>>, vector<16x32xf32>,
    %c0_i32_18 = arith.constant 0 : i32
    %28 = arith.cmpi eq, %arg1, %c0_i32_18 : i32
    %29 = arith.extui %28 : i1 to i32
    %c0_i32_19 = arith.constant 0 : i32
    %30 = arith.cmpi ne, %29, %c0_i32_19 : i32
    scf.if %30 {
      %c0_20 = arith.constant 0 : index
      %c0_21 = arith.constant 0 : index
      %31 = vector.load %arg8[%c0_20, %c0_21] : memref<16x32xf32, #tpu.memory_space<vmem>>, vector<16x32xf32>
      %c0_22 = arith.constant 0 : index
      %c0_23 = arith.constant 0 : index
      %32 = vector.load %arg6[%c0_22, %c0_23] : memref<1x32xf32, #tpu.memory_space<vmem>>, vector<1x32xf32>
      %33 = vector.broadcast %32 : vector<1x32xf32> to vector<16x32xf32>
      %34 = arith.addf %31, %33 : vector<16x32xf32>
      %c0_24 = arith.constant 0 : index
      %c0_25 = arith.constant 0 : index
      %35 = vector.load %arg7[%c0_24, %c0_25] : memref<16x32xf32, #tpu.memory_space<vmem>>, vector<16x32xf32>
      tpu.vector_store %arg7[%c0_24, %c0_25], %34 {strides = array<i32>} : memref<16x32xf32, #tpu.memory_space<vmem>>, vector<16x32xf32>,
    } else {
    }
    return
  }
  func.func @transform_0(%arg0: i32, %arg1: i32) -> (i32, i32) {
    %c0_i32 = arith.constant 0 : i32
    %c0_i32_0 = arith.constant 0 : i32
    return %arg0, %c0_i32 : i32, i32
  }
  func.func @transform_1(%arg0: i32, %arg1: i32) -> (i32, i32) {
    %c0_i32 = arith.constant 0 : i32
    %c0_i32_0 = arith.constant 0 : i32
    return %c0_i32, %arg1 : i32, i32
  }
  func.func @transform_2(%arg0: i32, %arg1: i32) -> (i32, i32) {
    %c0_i32 = arith.constant 0 : i32
    %c0_i32_0 = arith.constant 0 : i32
    return %c0_i32, %arg1 : i32, i32
  }
  func.func @transform_3(%arg0: i32, %arg1: i32) -> (i32, i32) {
    %c0_i32 = arith.constant 0 : i32
    %c0_i32_0 = arith.constant 0 : i32
    return %arg1, %c0_i32 : i32, i32
  }
  func.func @transform_4(%arg0: i32, %arg1: i32) -> (i32, i32) {
    %c0_i32 = arith.constant 0 : i32
    %c0_i32_0 = arith.constant 0 : i32
    %c0_i32_1 = arith.constant 0 : i32
    return %c0_i32, %c0_i32_0 : i32, i32
  }
  func.func @transform_5(%arg0: i32, %arg1: i32) -> (i32, i32) {
    %c0_i32 = arith.constant 0 : i32
    %c0_i32_0 = arith.constant 0 : i32
    return %arg0, %c0_i32 : i32, i32
  }
}

</mosaic_0001>

<llo_original>
// kernel: tpu_custom_call.1
$region0: #{tpu_custom_call.1}
  #allocation0 [shape = 'u32[]', space=smem, size = 0x4, offset = 0x4, fixed_abs, tag = 'smem constant byte address 0x4 - core index']
  #allocation1 [shape = 'u32[144,128]{1,0:T(1,128)}', space=vmem, size = 0x12000, scoped, tag = 'internal scratch']
  #allocation2 [shape = 'f32[16,32]{1,0:T(8,128)}', space=vmem, size = 0x2000, scoped, tag = 'scratch operand']
  %s0 = inlined_call_operand.hbm [shape: f32[16,32], index: 0, kind: input, shape index: {}]
  %s1 = inlined_call_operand.hbm [shape: f32[32,64], index: 1, kind: input, shape index: {}]
  %s2 = inlined_call_operand.hbm [shape: f32[1,64], index: 2, kind: input, shape index: {}]
  %s3 = inlined_call_operand.hbm [shape: f32[64,32], index: 3, kind: input, shape index: {}]
  %s4 = inlined_call_operand.hbm [shape: f32[1,32], index: 4, kind: input, shape index: {}]
  %s5 = inlined_call_operand.hbm [shape: f32[16,32], index: 5, kind: output, shape index: {}]
  %s6 = sld [smem:[#allocation0]]
  $region58: #{tpu_custom_call.1} parent=0
    _
  %s8 = ssub.s32 1, %s6
  %s9 = scalar_select 0, %s8, %s6
  $region1: #{tpu_custom_call.1} parent=0
    #allocation3 [shape = 'u8[8192]{0}', space=vmem, size = 0x2000, scoped, tag = 'input window, operand 0, single buffered']
    #allocation4 [shape = 's32[1]{0}', space=sflag, size = 0x4, scoped, tag = 'scoped memory for tpu_custom_call.1']
    #allocation5 [shape = 's32[1]{0}', space=sflag, size = 0x4, scoped, tag = 'scoped memory for tpu_custom_call.1']
    #allocation6 [shape = 'u8[16384]{0}', space=vmem, size = 0x4000, scoped, tag = 'input window, operand 1, single buffered']
    #allocation7 [shape = 's32[1]{0}', space=sflag, size = 0x4, scoped, tag = 'scoped memory for tpu_custom_call.1']
    #allocation8 [shape = 'u8[512]{0}', space=vmem, size = 0x400, scoped, tag = 'input window, operand 2, single buffered']
    #allocation9 [shape = 'u8[32768]{0}', space=vmem, size = 0x8000, scoped, tag = 'input window, operand 3, single buffered']
    #allocation10 [shape = 's32[1]{0}', space=sflag, size = 0x4, scoped, tag = 'scoped memory for tpu_custom_call.1']
    #allocation11 [shape = 'u8[512]{0}', space=vmem, size = 0x400, scoped, tag = 'input window, operand 4, single buffered']
    #allocation12 [shape = 'u8[8192]{0}', space=vmem, size = 0x2000, scoped, tag = 'output window, operand 0, single buffered']
    %10 = vsyncpa [#allocation4], 0
    %11 = vsyncpa [#allocation7], 0
    %12 = vsyncpa [#allocation10], 0
    %13 = vsyncpa [#allocation5], 0
    // Predicated region
    $region2: #{tpu_custom_call.1} parent=1 // pred_check
      _
    $region3: #{tpu_custom_call.1} parent=1 // pred_check_branch
      %15 = sbr.rel (0) target = $region5
    $region4: #{tpu_custom_call.1} parent=1 // pred_region
      %s17 = ssub.s32 256, 256
      %18 = vsyncadd [#allocation4], %s17
      %s19 = sshll.u32 [#allocation3], 4
      %s20 = int_to_ptr.vmem [resolvable:$true] %s19
      %25 = dma.hbm_to_vmem [thread:$0]  %s0, 256, %s20, [#allocation4], 128, 128, 8
    $region5: #{tpu_custom_call.1} parent=1 // pred_fallthru
      _
    // Predicated region
    $region6: #{tpu_custom_call.1} parent=1 // pred_check
      _
    $region7: #{tpu_custom_call.1} parent=1 // pred_check_branch
      %27 = sbr.rel (0) target = $region9
    $region8: #{tpu_custom_call.1} parent=1 // pred_region
      %s29 = ssub.s32 512, 512
      %30 = vsyncadd [#allocation7], %s29
      %s31 = sshll.u32 [#allocation6], 4
      %s32 = int_to_ptr.vmem [resolvable:$true] %s31
      %37 = dma.hbm_to_vmem [thread:$0]  %s1, 512, %s32, [#allocation7], 128, 128, 8
    $region9: #{tpu_custom_call.1} parent=1 // pred_fallthru
      _
    // Predicated region
    $region10: #{tpu_custom_call.1} parent=1 // pred_check
      _
    $region11: #{tpu_custom_call.1} parent=1 // pred_check_branch
      %39 = sbr.rel (0) target = $region13
    $region12: #{tpu_custom_call.1} parent=1 // pred_region
      %s41 = ssub.s32 16, 16
      %42 = vsyncadd [#allocation7], %s41
      %s44 = sshll.u32 [#allocation8], 4
      %s45 = int_to_ptr.vmem [resolvable:$true] %s44
      %47 = dma.hbm_to_vmem [thread:$0]  %s2, 16, %s45, [#allocation7]
    $region13: #{tpu_custom_call.1} parent=1 // pred_fallthru
      _
    // Predicated region
    $region14: #{tpu_custom_call.1} parent=1 // pred_check
      _
    $region15: #{tpu_custom_call.1} parent=1 // pred_check_branch
      %49 = sbr.rel (0) target = $region17
    $region16: #{tpu_custom_call.1} parent=1 // pred_region
      %s51 = ssub.s32 1024, 1024
      %52 = vsyncadd [#allocation10], %s51
      %s53 = sshll.u32 [#allocation9], 4
      %s54 = int_to_ptr.vmem [resolvable:$true] %s53
      %59 = dma.hbm_to_vmem [thread:$0]  %s3, 1024, %s54, [#allocation10], 128, 128, 8
    $region17: #{tpu_custom_call.1} parent=1 // pred_fallthru
      _
    // Predicated region
    $region18: #{tpu_custom_call.1} parent=1 // pred_check
      _
    $region19: #{tpu_custom_call.1} parent=1 // pred_check_branch
      %61 = sbr.rel (0) target = $region21
    $region20: #{tpu_custom_call.1} parent=1 // pred_region
      %s63 = ssub.s32 16, 16
      %64 = vsyncadd [#allocation10], %s63
      %s66 = sshll.u32 [#allocation11], 4
      %s67 = int_to_ptr.vmem [resolvable:$true] %s66
      %69 = dma.hbm_to_vmem [thread:$0]  %s4, 16, %s67, [#allocation10]
    $region21: #{tpu_custom_call.1} parent=1 // pred_fallthru
      _
    // Predicated region
    $region22: #{tpu_custom_call.1} parent=1 // pred_check
      _
    $region23: #{tpu_custom_call.1} parent=1 // pred_check_branch
      %71 = sbr.rel (0) target = $region25
    $region24: #{tpu_custom_call.1} parent=1 // pred_region
      %72 = dma.done [#allocation4], 256
    $region25: #{tpu_custom_call.1} parent=1 // pred_fallthru
      _
    // Predicated region
    $region26: #{tpu_custom_call.1} parent=1 // pred_check
      _
    $region27: #{tpu_custom_call.1} parent=1 // pred_check_branch
      %74 = sbr.rel (0) target = $region29
    $region28: #{tpu_custom_call.1} parent=1 // pred_region
      %75 = dma.done [#allocation7], 512
    $region29: #{tpu_custom_call.1} parent=1 // pred_fallthru
      _
    // Predicated region
    $region30: #{tpu_custom_call.1} parent=1 // pred_check
      _
    $region31: #{tpu_custom_call.1} parent=1 // pred_check_branch
      %77 = sbr.rel (0) target = $region33
    $region32: #{tpu_custom_call.1} parent=1 // pred_region
      %78 = dma.done [#allocation7], 16
    $region33: #{tpu_custom_call.1} parent=1 // pred_fallthru
      _
    // Predicated region
    $region34: #{tpu_custom_call.1} parent=1 // pred_check
      _
    $region35: #{tpu_custom_call.1} parent=1 // pred_check_branch
      %80 = sbr.rel (0) target = $region37
    $region36: #{tpu_custom_call.1} parent=1 // pred_region
      %81 = dma.done [#allocation10], 1024
    $region37: #{tpu_custom_call.1} parent=1 // pred_fallthru
      _
    // Predicated region
    $region38: #{tpu_custom_call.1} parent=1 // pred_check
      _
    $region39: #{tpu_custom_call.1} parent=1 // pred_check_branch
      %83 = sbr.rel (0) target = $region41
    $region40: #{tpu_custom_call.1} parent=1 // pred_region
      %84 = dma.done [#allocation10], 16
    $region41: #{tpu_custom_call.1} parent=1 // pred_fallthru
      _
    %p85 = scmp.eq.s32.totalorder 0, 0
    // Predicated region
    $region42: #{tpu_custom_call.1} parent=1 // pred_check
      %p86 = pneg %p85
    $region43: #{tpu_custom_call.1} parent=1 // pred_check_branch
      %88 = sbr.rel (%p86) target = $region45
    $region44: #{tpu_custom_call.1} parent=1 // pred_region
      %vm89 = vcmask 261120
      %90 = vst.msk [vmem:[#allocation2] sm:$0xff] %vm89, 0.0
      %91 = vst.msk [vmem:[#allocation2 + $0x8] sm:$0xff] %vm89, 0.0
    $region45: #{tpu_custom_call.1} parent=1 // pred_fallthru
      _
    %v92 = vld [vmem:[#allocation3] sm:$0xff]
    %v93 = vld [vmem:[#allocation3 + $0x8] sm:$0xff]
    %v94 = vld [vmem:[#allocation6] sm:$0xff]
    %v95 = vld [vmem:[#allocation6 + $0x8] sm:$0xff]
    %v96 = vld [vmem:[#allocation6 + $0x10] sm:$0xff]
    %v97 = vld [vmem:[#allocation6 + $0x18] sm:$0xff]
    %v98 = vld [vmem:[#allocation8] sm:$0x1]
    %v100 = vlaneseq
    %v101 = vshrl.u32 %v100, 7
    %v102 = vsub.s32 0, %v101
    %v103 = vrot.slane %v98, %v102
    %vm105 = vcmask 261120
    %v107 = vsel %vm105, %v92, 0
    %v110 = vsel %vm105, %v93, 0
    %112 = vmatprep.subr.mxu0 0.0
    %113 = vmatpush1.msra.mxu0 %v94
    %114 = vmatprep.subr.mxu0 0.0
    %115 = vmatpush1.msra.mxu0 %v95
    %116 = vmatprep.subr.mxu0 0.0
    %117 = vmatpush1.msra.mxu0 %v96
    %118 = vmatprep.subr.mxu0 0.0
    %119 = vmatpush1.msra.mxu0 %v97
    %120 = vmatprep.subr.mxu0 0.0
    %121 = vmatpush1.msra.mxu0 0.0
    %122 = vmatprep.subr.mxu0 0.0
    %123 = vmatpush1.msra.mxu0 0.0
    %124 = vmatprep.subr.mxu0 0.0
    %125 = vmatpush1.msra.mxu0 0.0
    %126 = vmatprep.subr.mxu0 0.0
    %127 = vmatpush1.msra.mxu0 0.0
    %128 = vmatprep.subr.mxu0 0.0
    %129 = vmatpush1.msra.mxu0 0.0
    %130 = vmatprep.subr.mxu0 0.0
    %131 = vmatpush1.msra.mxu0 0.0
    %132 = vmatprep.subr.mxu0 0.0
    %133 = vmatpush1.msra.mxu0 0.0
    %134 = vmatprep.subr.mxu0 0.0
    %135 = vmatpush1.msra.mxu0 0.0
    %136 = vmatprep.subr.mxu0 0.0
    %137 = vmatpush1.msra.mxu0 0.0
    %138 = vmatprep.subr.mxu0 0.0
    %139 = vmatpush1.msra.mxu0 0.0
    %140 = vmatprep.subr.mxu0 0.0
    %141 = vmatpush1.msra.mxu0 0.0
    %142 = vmatprep.subr.mxu0 0.0
    %143 = vmatpush1.msra.mxu0 0.0
    %144 = vmatprep.subr.mxu0 0.0
    %145 = vmatpush1.msra.mxu0 0.0
    %146 = vmatprep.subr.mxu0 0.0
    %147 = vmatpush1.msra.mxu0 0.0
    %148 = vmatprep.subr.mxu0 0.0
    %149 = vmatpush1.msra.mxu0 0.0
    %150 = vmatprep.subr.mxu0 0.0
    %151 = vmatpush1.msra.mxu0 0.0
    %152 = vmatprep.subr.mxu0 0.0
    %153 = vmatpush1.msra.mxu0 0.0
    %154 = vmatprep.subr.mxu0 0.0
    %155 = vmatpush1.msra.mxu0 0.0
    %156 = vmatprep.subr.mxu0 0.0
    %157 = vmatpush1.msra.mxu0 0.0
    %158 = vmatprep.subr.mxu0 0.0
    %159 = vmatpush1.msra.mxu0 0.0
    %160 = vmatprep.subr.mxu0 0.0
    %161 = vmatpush1.msra.mxu0 0.0
    %162 = vmatprep.subr.mxu0 0.0
    %163 = vmatpush1.msra.mxu0 0.0
    %164 = vmatprep.subr.mxu0 0.0
    %165 = vmatpush1.msra.mxu0 0.0
    %166 = vmatprep.subr.mxu0 0.0
    %167 = vmatpush1.msra.mxu0 0.0
    %168 = vmatprep.subr.mxu0 0.0
    %169 = vmatpush1.msra.mxu0 0.0
    %170 = vmatprep.subr.mxu0 0.0
    %171 = vmatpush1.msra.mxu0 0.0
    %172 = vmatprep.subr.mxu0 0.0
    %173 = vmatpush1.msra.mxu0 0.0
    %174 = vmatprep.subr.mxu0 0.0
    %175 = vmatpush1.msra.mxu0 0.0
    %176 = vmatprep.mubr.f32.mxu0 0.0
    %177 = vmatmul.mubr.f32.gmra.mrb[0].mxu0 %v107
    %v178 = vpop.f32.mrb[0].mxu0
    %v179 = vadd.f32 %v103, %v178
    %v180 = vpop.f32.mrb[0].mxu0
    %181 = vmatprep.mubr.f32.mxu0 0.0
    %182 = vmatmul.mubr.f32.gmra.mrb[0].mxu0 %v110
    %v183 = vpop.f32.mrb[0].mxu0
    %v184 = vadd.f32 %v103, %v183
    %v185 = vpop.f32.mrb[0].mxu0
    %186 = vdwg.mxu0
    %v187 = vmul.f32 %v179, %v179
    %v188 = vmul.f32 %v184, %v184
    %v189 = vmul.f32 %v179, 0.5
    %v190 = vmul.f32 %v184, 0.5
    %v191 = vmul.f32 %v179, 0.7978846
    %v192 = vmul.f32 %v184, 0.7978846
    %v193 = vmul.f32 %v187, 0.044715
    %v194 = vmul.f32 %v188, 0.044715
    %v195 = vadd.f32 %v193, 1.0
    %v196 = vadd.f32 %v194, 1.0
    %v197 = vmul.f32 %v191, %v195
    %v198 = vmul.f32 %v192, %v196
    %v199 = vtanh.pop %v197
    %v200 = vtanh.pop %v198
    %v201 = vadd.f32 %v199, 1.0
    %v202 = vadd.f32 %v200, 1.0
    %v203 = vmul.f32 %v189, %v201
    %v204 = vmul.f32 %v190, %v202
    %v205 = vld [vmem:[#allocation2] sm:$0xff]
    %v206 = vld [vmem:[#allocation2 + $0x8] sm:$0xff]
    %v207 = vld [vmem:[#allocation9] sm:$0xff]
    %v208 = vld [vmem:[#allocation9 + $0x8] sm:$0xff]
    %v209 = vld [vmem:[#allocation9 + $0x10] sm:$0xff]
    %v210 = vld [vmem:[#allocation9 + $0x18] sm:$0xff]
    %v211 = vld [vmem:[#allocation9 + $0x20] sm:$0xff]
    %v212 = vld [vmem:[#allocation9 + $0x28] sm:$0xff]
    %v213 = vld [vmem:[#allocation9 + $0x30] sm:$0xff]
    %v214 = vld [vmem:[#allocation9 + $0x38] sm:$0xff]
    %vm215 = vcmask 523264
    %v217 = vsel %vm215, %v203, 0
    %v220 = vsel %vm215, %v204, 0
    %222 = vmatprep.subr.mxu0 0.0
    %223 = vmatpush1.msra.mxu0 %v207
    %224 = vmatprep.subr.mxu0 0.0
    %225 = vmatpush1.msra.mxu0 %v208
    %226 = vmatprep.subr.mxu0 0.0
    %227 = vmatpush1.msra.mxu0 %v209
    %228 = vmatprep.subr.mxu0 0.0
    %229 = vmatpush1.msra.mxu0 %v210
    %230 = vmatprep.subr.mxu0 0.0
    %231 = vmatpush1.msra.mxu0 %v211
    %232 = vmatprep.subr.mxu0 0.0
    %233 = vmatpush1.msra.mxu0 %v212
    %234 = vmatprep.subr.mxu0 0.0
    %235 = vmatpush1.msra.mxu0 %v213
    %236 = vmatprep.subr.mxu0 0.0
    %237 = vmatpush1.msra.mxu0 %v214
    %238 = vmatprep.subr.mxu0 0.0
    %239 = vmatpush1.msra.mxu0 0.0
    %240 = vmatprep.subr.mxu0 0.0
    %241 = vmatpush1.msra.mxu0 0.0
    %242 = vmatprep.subr.mxu0 0.0
    %243 = vmatpush1.msra.mxu0 0.0
    %244 = vmatprep.subr.mxu0 0.0
    %245 = vmatpush1.msra.mxu0 0.0
    %246 = vmatprep.subr.mxu0 0.0
    %247 = vmatpush1.msra.mxu0 0.0
    %248 = vmatprep.subr.mxu0 0.0
    %249 = vmatpush1.msra.mxu0 0.0
    %250 = vmatprep.subr.mxu0 0.0
    %251 = vmatpush1.msra.mxu0 0.0
    %252 = vmatprep.subr.mxu0 0.0
    %253 = vmatpush1.msra.mxu0 0.0
    %254 = vmatprep.subr.mxu0 0.0
    %255 = vmatpush1.msra.mxu0 0.0
    %256 = vmatprep.subr.mxu0 0.0
    %257 = vmatpush1.msra.mxu0 0.0
    %258 = vmatprep.subr.mxu0 0.0
    %259 = vmatpush1.msra.mxu0 0.0
    %260 = vmatprep.subr.mxu0 0.0
    %261 = vmatpush1.msra.mxu0 0.0
    %262 = vmatprep.subr.mxu0 0.0
    %263 = vmatpush1.msra.mxu0 0.0
    %264 = vmatprep.subr.mxu0 0.0
    %265 = vmatpush1.msra.mxu0 0.0
    %266 = vmatprep.subr.mxu0 0.0
    %267 = vmatpush1.msra.mxu0 0.0
    %268 = vmatprep.subr.mxu0 0.0
    %269 = vmatpush1.msra.mxu0 0.0
    %270 = vmatprep.subr.mxu0 0.0
    %271 = vmatpush1.msra.mxu0 0.0
    %272 = vmatprep.subr.mxu0 0.0
    %273 = vmatpush1.msra.mxu0 0.0
    %274 = vmatprep.subr.mxu0 0.0
    %275 = vmatpush1.msra.mxu0 0.0
    %276 = vmatprep.subr.mxu0 0.0
    %277 = vmatpush1.msra.mxu0 0.0
    %278 = vmatprep.subr.mxu0 0.0
    %279 = vmatpush1.msra.mxu0 0.0
    %280 = vmatprep.subr.mxu0 0.0
    %281 = vmatpush1.msra.mxu0 0.0
    %282 = vmatprep.subr.mxu0 0.0
    %283 = vmatpush1.msra.mxu0 0.0
    %284 = vmatprep.subr.mxu0 0.0
    %285 = vmatpush1.msra.mxu0 0.0
    %286 = vmatprep.mubr.f32.mxu0 0.0
    %287 = vmatmul.mubr.f32.gmra.mrb[0].mxu0 %v217
    %v288 = vpop.f32.mrb[0].mxu0
    %v289 = vadd.f32 0.0, %v288
    %v290 = vpop.f32.mrb[0].mxu0
    %291 = vmatprep.mubr.f32.mxu0 0.0
    %292 = vmatmul.mubr.f32.gmra.mrb[0].mxu0 %v220
    %v293 = vpop.f32.mrb[0].mxu0
    %v294 = vadd.f32 0.0, %v293
    %v295 = vpop.f32.mrb[0].mxu0
    %296 = vdwg.mxu0
    %v297 = vadd.f32 %v205, %v289
    %v298 = vadd.f32 %v206, %v294
    %299 = vst.msk [vmem:[#allocation2] sm:$0xff] %vm105, %v297
    %300 = vst.msk [vmem:[#allocation2 + $0x8] sm:$0xff] %vm105, %v298
    // Predicated region
    $region46: #{tpu_custom_call.1} parent=1 // pred_check
      %p301 = pneg %p85
    $region47: #{tpu_custom_call.1} parent=1 // pred_check_branch
      %303 = sbr.rel (%p301) target = $region49
    $region48: #{tpu_custom_call.1} parent=1 // pred_region
      %v304 = vld [vmem:[#allocation2] sm:$0xff]
      %v305 = vld [vmem:[#allocation2 + $0x8] sm:$0xff]
      %v306 = vld [vmem:[#allocation11] sm:$0x1]
      %v308 = vlaneseq
      %v309 = vshrl.u32 %v308, 7
      %v310 = vsub.s32 0, %v309
      %v311 = vrot.slane %v306, %v310
      %v313 = vadd.f32 %v304, %v311
      %v314 = vadd.f32 %v305, %v311
      %315 = vst.msk [vmem:[#allocation12] sm:$0xff] %vm105, %v313
      %316 = vst.msk [vmem:[#allocation12 + $0x8] sm:$0xff] %vm105, %v314
    $region49: #{tpu_custom_call.1} parent=1 // pred_fallthru
      _
    // Predicated region
    $region50: #{tpu_custom_call.1} parent=1 // pred_check
      _
    $region51: #{tpu_custom_call.1} parent=1 // pred_check_branch
      %318 = sbr.rel (0) target = $region53
    $region52: #{tpu_custom_call.1} parent=1 // pred_region
      %s320 = ssub.s32 256, 256
      %321 = vsyncadd [#allocation5], %s320
      %s322 = sshll.u32 [#allocation12], 4
      %s323 = int_to_ptr.vmem [resolvable:$true] %s322
      %328 = dma.vmem_to_hbm [thread:$0]  %s323, 256, %s5, [#allocation5], 128, 128, 8
    $region53: #{tpu_custom_call.1} parent=1 // pred_fallthru
      _
    // Predicated region
    $region54: #{tpu_custom_call.1} parent=1 // pred_check
      _
    $region55: #{tpu_custom_call.1} parent=1 // pred_check_branch
      %330 = sbr.rel (0) target = $region57
    $region56: #{tpu_custom_call.1} parent=1 // pred_region
      %331 = dma.done [#allocation5], 256
    $region57: #{tpu_custom_call.1} parent=1 // pred_fallthru
      _
    %332 = vsyncpa [#allocation4], 1
    %333 = vsyncpa [#allocation7], 1
    %334 = vsyncpa [#allocation10], 1
    %335 = vsyncpa [#allocation5], 1

</llo_original>
